<compile_context>
chip_gen: v6e
topology: v6e:2x2x1
jax: 0.10.0
libtpu: 0.0.40
codegen_flags: <defaults>
</compile_context>

<pallas_src>
import jax
import jax.numpy as jnp
from jax import lax
from jax.experimental import pallas as pl
from jax.experimental.pallas import tpu as pltpu

# Small, module-consistent sizes.
B, T, D_IN, H, C = 2, 8, 16, 32, 4

# Packed activation-slab layout: cols [0:D_IN) = x, col D_IN = validity mask,
# cols [D_IN+1:XM_W) = zero padding (8-multiple contraction dim).
XM_W = 24
MASK_COL = D_IN

# Packed weight-slab row offsets (all 8-aligned so in-kernel slices start on a
# sublane-tile boundary).
R_W1, R_B1, R_WX, R_WH, R_BH, R_W2T, R_B2 = 0, 24, 32, 64, 96, 104, 112
SLAB_ROWS = 120


def _seq_classifier_kernel(xm_ref, slab_ref, out_ref, h_scr):
    # xm_ref  : (B*T, XM_W) f32, batch-major rows b*T + t
    # slab_ref: (SLAB_ROWS, H) f32 packed weights
    # out_ref : (B, C, T) f32 per-timestep logits, final layout
    # h_scr   : (B, T, H) f32 VMEM scratch for hidden states
    xm = xm_ref[...]

    w1  = slab_ref[R_W1:R_W1 + XM_W, :]        # (24, 32); rows >= D_IN are zero
    b1  = slab_ref[R_B1:R_B1 + 1, :]           # (1, 32)
    wx  = slab_ref[R_WX:R_WX + H, :]           # (32, 32)
    wh  = slab_ref[R_WH:R_WH + H, :]           # (32, 32)
    bh  = slab_ref[R_BH:R_BH + 1, :]           # (1, 32)
    w2t = slab_ref[R_W2T:R_W2T + C, :]         # (4, 32) = w2.T
    b2c = slab_ref[R_B2:R_B2 + C, 0:1]         # (4, 1)

    # --- pre_recurrence: Linear + ReLU over all B*T rows (one MXU pass).
    # The mask/pad columns of xm hit zero rows of the packed w1: no slicing.
    pre = jnp.maximum(jnp.dot(xm, w1, preferred_element_type=jnp.float32) + b1, 0.0)

    # --- hoisted RNN input projection (+ hidden bias folded in): one MXU pass.
    pre_z = (jnp.dot(pre, wx, preferred_element_type=jnp.float32) + bh
             ).reshape(B, T, H)                # free tiling split: 16 rows -> 2x8

    # --- recurrence: h_t = tanh(pre_z[:, t] + h_{t-1} @ Wh), batched over B.
    # Static T=8 unroll; the per-step scratch store overlaps the next step's
    # MXU + tanh (EUP) latency, so no epilogue concatenate is needed.
    h = jnp.zeros((B, H), jnp.float32)
    for t in range(T):
        h = jnp.tanh(pre_z[:, t, :]
                     + jnp.dot(h, wh, preferred_element_type=jnp.float32))
        h_scr[:, t, :] = h

    # --- post_recurrence: zero hidden states at padded timesteps (padded logits
    # become b2, matching the reference), project with pre-transposed w2 and
    # emit (B, C, T) directly so no wrapper-side transpose HLO is needed.
    mask = xm[:, MASK_COL:MASK_COL + 1]        # (B*T, 1) validity column
    for b in range(B):
        h_b = h_scr[b, :, :] * mask[b * T:(b + 1) * T, :]                 # (T, H)
        out_ref[b, :, :] = (jnp.dot(w2t, h_b.T, preferred_element_type=jnp.float32)
                            + b2c)                                        # (C, T)


def pack_params(params):
    """One-time init-side packing of the seven weight/bias arrays into a slab."""
    w1, b1, wx, wh, bh, w2, b2 = params
    slab = jnp.zeros((SLAB_ROWS, H), jnp.float32)
    slab = slab.at[R_W1:R_W1 + D_IN, :].set(w1)        # rows D_IN..XM_W-1 stay 0
    slab = slab.at[R_B1, :].set(b1.reshape(H))
    slab = slab.at[R_WX:R_WX + H, :].set(wx)
    slab = slab.at[R_WH:R_WH + H, :].set(wh)
    slab = slab.at[R_BH, :].set(bh.reshape(H))
    slab = slab.at[R_W2T:R_W2T + C, :].set(w2.T)
    slab = slab.at[R_B2:R_B2 + C, 0].set(b2.reshape(C))
    return slab


@jax.jit
def seq_classifier_forward(x, seq_len, weight_slab):
    """x: (B, T, D_IN) f32, seq_len: (B,) int32, weight_slab: packed.  -> (B, C, T)."""
    # Free reshape (batch-major, contiguous) + one tiny fusion building the
    # validity-mask column; no transposes around the custom call.
    mask = (jnp.arange(T, dtype=jnp.int32)[None, :] < seq_len[:, None]
            ).astype(jnp.float32)                                  # (B, T)
    xm = jnp.zeros((B * T, XM_W), jnp.float32)
    xm = xm.at[:, :D_IN].set(x.reshape(B * T, D_IN))
    xm = xm.at[:, MASK_COL].set(mask.reshape(B * T))

    vmem = lambda: pl.BlockSpec(memory_space=pltpu.MemorySpace.VMEM)
    return pl.pallas_call(
        _seq_classifier_kernel,
        out_shape=jax.ShapeDtypeStruct((B, C, T), jnp.float32),
        in_specs=[vmem(), vmem()],
        out_specs=vmem(),
        scratch_shapes=[pltpu.VMEM((B, T, H), jnp.float32)],
        cost_estimate=pl.CostEstimate(flops=94_208, transcendentals=512,
                                      bytes_accessed=17_152),
    )(xm, weight_slab)


def _reference_forward(x, seq_len, params):
    w1, b1, wx, wh, bh, w2, b2 = params
    pre = jnp.maximum(x @ w1 + b1, 0.0)                       # (B, T, H)

    def step(h, z_t):                                         # z_t: (B, H)
        h = jnp.tanh(z_t @ wx + h @ wh + bh)
        return h, h

    _, hs = lax.scan(step, jnp.zeros((B, H), jnp.float32),
                     jnp.swapaxes(pre, 0, 1))                 # (T, B, H)
    hs = jnp.swapaxes(hs, 0, 1)                               # (B, T, H)
    mask = jnp.arange(T)[None, :, None] < seq_len[:, None, None]
    hs = jnp.where(mask, hs, 0.0)
    logits = hs @ w2 + b2                                     # (B, T, C)
    return jnp.transpose(logits, (0, 2, 1))                   # (B, C, T)


def _init_params(key):
    ks = jax.random.split(key, 7)
    scale = 0.1
    w1 = scale * jax.random.normal(ks[0], (D_IN, H), jnp.float32)
    b1 = scale * jax.random.normal(ks[1], (1, H), jnp.float32)
    wx = scale * jax.random.normal(ks[2], (H, H), jnp.float32)
    wh = scale * jax.random.normal(ks[3], (H, H), jnp.float32)
    bh = scale * jax.random.normal(ks[4], (1, H), jnp.float32)
    w2 = scale * jax.random.normal(ks[5], (H, C), jnp.float32)
    b2 = scale * jax.random.normal(ks[6], (1, C), jnp.float32)
    return (w1, b1, wx, wh, bh, w2, b2)


if __name__ == "__main__":
    key = jax.random.PRNGKey(0)
    k_x, k_p = jax.random.split(key)
    params = _init_params(k_p)
    weight_slab = pack_params(params)          # one-time, init-side packing

    # Padded batch as produced by batch_seqs_by_sort_and_pad (lengths sorted desc).
    x = jax.random.normal(k_x, (B, T, D_IN), jnp.float32)
    seq_len = jnp.array([T, T - 3], dtype=jnp.int32)
    pad_mask = jnp.arange(T)[None, :, None] < seq_len[:, None, None]
    x = jnp.where(pad_mask, x, 0.0)            # zero padding region like torch.zeros batch_x

    out = seq_classifier_forward(x, seq_len, weight_slab)
    out = jax.block_until_ready(out)

    ref = _reference_forward(x, seq_len, params)
    assert out.shape == (B, C, T)
    assert jnp.allclose(out, ref, atol=1e-4, rtol=1e-4), "mismatch vs reference"

    # TODO(synk): batch_seqs_by_sort_and_pad is host-side Python batching glue, not kernel work.
    # TODO(synk): seq_classifier sets recurrence.return_final_hidden=True; per-timestep logits
    #   are kept for parity with the previously validated reference semantics.
    print("KERNEL_OK")
</pallas_src>

<mosaic_0001>
module attributes {stable_mosaic.version = 11 : i64} {
  func.func @_seq_classifier_kernel(%arg0: memref<16x24xf32, #tpu.memory_space<vmem>>, %arg1: memref<120x32xf32, #tpu.memory_space<vmem>>, %arg2: memref<2x4x8xf32, #tpu.memory_space<vmem>>, %arg3: memref<2x8x32xf32, #tpu.memory_space<vmem>>) attributes {dimension_semantics = [], scalar_prefetch = 0 : i64, scratch_operands = 1 : i64, tpu.core_type = #tpu.core_type<tc>} {
    %c0 = arith.constant 0 : index
    %c0_0 = arith.constant 0 : index
    %0 = vector.load %arg0[%c0, %c0_0] : memref<16x24xf32, #tpu.memory_space<vmem>>, vector<16x24xf32>
    %c0_1 = arith.constant 0 : index
    %c0_2 = arith.constant 0 : index
    %1 = vector.load %arg1[%c0_1, %c0_2] : memref<120x32xf32, #tpu.memory_space<vmem>>, vector<24x32xf32>
    %c24 = arith.constant 24 : index
    %c0_3 = arith.constant 0 : index
    %2 = vector.load %arg1[%c24, %c0_3] : memref<120x32xf32, #tpu.memory_space<vmem>>, vector<1x32xf32>
    %c32 = arith.constant 32 : index
    %c0_4 = arith.constant 0 : index
    %3 = vector.load %arg1[%c32, %c0_4] : memref<120x32xf32, #tpu.memory_space<vmem>>, vector<32x32xf32>
    %c64 = arith.constant 64 : index
    %c0_5 = arith.constant 0 : index
    %4 = vector.load %arg1[%c64, %c0_5] : memref<120x32xf32, #tpu.memory_space<vmem>>, vector<32x32xf32>
    %c96 = arith.constant 96 : index
    %c0_6 = arith.constant 0 : index
    %5 = vector.load %arg1[%c96, %c0_6] : memref<120x32xf32, #tpu.memory_space<vmem>>, vector<1x32xf32>
    %c104 = arith.constant 104 : index
    %c0_7 = arith.constant 0 : index
    %6 = vector.load %arg1[%c104, %c0_7] : memref<120x32xf32, #tpu.memory_space<vmem>>, vector<4x32xf32>
    %c112 = arith.constant 112 : index
    %c0_8 = arith.constant 0 : index
    %7 = vector.load %arg1[%c112, %c0_8] : memref<120x32xf32, #tpu.memory_space<vmem>>, vector<4x1xf32>
    %cst = arith.constant dense<0.000000e+00> : vector<16x32xf32>
    %8 = tpu.matmul %0, %1, %cst {dimension_numbers = #tpu.dot_dimension_numbers<[1], [0], [0], [1], [0, 0, 1, 1], [], []>} : vector<16x24xf32>, vector<24x32xf32>, vector<16x32xf32> -> vector<16x32xf32>
    %9 = vector.broadcast %2 : vector<1x32xf32> to vector<16x32xf32>
    %10 = arith.addf %8, %9 : vector<16x32xf32>
    %cst_9 = arith.constant 0.000000e+00 : f32
    %11 = vector.broadcast %cst_9 : f32 to vector<16x32xf32>
    %12 = arith.maximumf %10, %11 : vector<16x32xf32>
    %cst_10 = arith.constant dense<0.000000e+00> : vector<16x32xf32>
    %13 = tpu.matmul %12, %3, %cst_10 {dimension_numbers = #tpu.dot_dimension_numbers<[1], [0], [0], [1], [0, 0, 1, 1], [], []>} : vector<16x32xf32>, vector<32x32xf32>, vector<16x32xf32> -> vector<16x32xf32>
    %14 = vector.broadcast %5 : vector<1x32xf32> to vector<16x32xf32>
    %15 = arith.addf %13, %14 : vector<16x32xf32>
    %16 = vector.shape_cast %15 : vector<16x32xf32> to vector<2x8x32xf32>
    %cst_11 = arith.constant 0.000000e+00 : f32
    %17 = vector.broadcast %cst_11 : f32 to vector<2x32xf32>
    %18 = vector.extract_strided_slice %16 {offsets = [0, 0, 0], sizes = [2, 1, 32], strides = [1, 1, 1]} : vector<2x8x32xf32> to vector<2x1x32xf32>
    %19 = vector.shape_cast %18 : vector<2x1x32xf32> to vector<2x32xf32>
    %cst_12 = arith.constant dense<0.000000e+00> : vector<2x32xf32>
    %20 = tpu.matmul %17, %4, %cst_12 {dimension_numbers = #tpu.dot_dimension_numbers<[1], [0], [0], [1], [0, 0, 1, 1], [], []>} : vector<2x32xf32>, vector<32x32xf32>, vector<2x32xf32> -> vector<2x32xf32>
    %21 = arith.addf %19, %20 : vector<2x32xf32>
    %22 = math.tanh %21 : vector<2x32xf32>
    %c0_13 = arith.constant 0 : index
    %c0_14 = arith.constant 0 : index
    %c0_15 = arith.constant 0 : index
    %23 = vector.load %arg3[%c0_13, %c0_14, %c0_15] : memref<2x8x32xf32, #tpu.memory_space<vmem>>, vector<2x1x32xf32>
    %24 = vector.shape_cast %23 : vector<2x1x32xf32> to vector<2x32xf32>
    %25 = vector.shape_cast %22 : vector<2x32xf32> to vector<2x1x32xf32>
    tpu.vector_store %arg3[%c0_13, %c0_14, %c0_15], %25 {strides = array<i32>} : memref<2x8x32xf32, #tpu.memory_space<vmem>>, vector<2x1x32xf32>,
    %26 = vector.extract_strided_slice %16 {offsets = [0, 1, 0], sizes = [2, 1, 32], strides = [1, 1, 1]} : vector<2x8x32xf32> to vector<2x1x32xf32>
    %27 = vector.shape_cast %26 : vector<2x1x32xf32> to vector<2x32xf32>
    %cst_16 = arith.constant dense<0.000000e+00> : vector<2x32xf32>
    %28 = tpu.matmul %22, %4, %cst_16 {dimension_numbers = #tpu.dot_dimension_numbers<[1], [0], [0], [1], [0, 0, 1, 1], [], []>} : vector<2x32xf32>, vector<32x32xf32>, vector<2x32xf32> -> vector<2x32xf32>
    %29 = arith.addf %27, %28 : vector<2x32xf32>
    %30 = math.tanh %29 : vector<2x32xf32>
    %c0_17 = arith.constant 0 : index
    %c1 = arith.constant 1 : index
    %c0_18 = arith.constant 0 : index
    %31 = vector.load %arg3[%c0_17, %c1, %c0_18] : memref<2x8x32xf32, #tpu.memory_space<vmem>>, vector<2x1x32xf32>
    %32 = vector.shape_cast %31 : vector<2x1x32xf32> to vector<2x32xf32>
    %33 = vector.shape_cast %30 : vector<2x32xf32> to vector<2x1x32xf32>
    tpu.vector_store %arg3[%c0_17, %c1, %c0_18], %33 {strides = array<i32>} : memref<2x8x32xf32, #tpu.memory_space<vmem>>, vector<2x1x32xf32>,
    %34 = vector.extract_strided_slice %16 {offsets = [0, 2, 0], sizes = [2, 1, 32], strides = [1, 1, 1]} : vector<2x8x32xf32> to vector<2x1x32xf32>
    %35 = vector.shape_cast %34 : vector<2x1x32xf32> to vector<2x32xf32>
    %cst_19 = arith.constant dense<0.000000e+00> : vector<2x32xf32>
    %36 = tpu.matmul %30, %4, %cst_19 {dimension_numbers = #tpu.dot_dimension_numbers<[1], [0], [0], [1], [0, 0, 1, 1], [], []>} : vector<2x32xf32>, vector<32x32xf32>, vector<2x32xf32> -> vector<2x32xf32>
    %37 = arith.addf %35, %36 : vector<2x32xf32>
    %38 = math.tanh %37 : vector<2x32xf32>
    %c0_20 = arith.constant 0 : index
    %c2 = arith.constant 2 : index
    %c0_21 = arith.constant 0 : index
    %39 = vector.load %arg3[%c0_20, %c2, %c0_21] : memref<2x8x32xf32, #tpu.memory_space<vmem>>, vector<2x1x32xf32>
    %40 = vector.shape_cast %39 : vector<2x1x32xf32> to vector<2x32xf32>
    %41 = vector.shape_cast %38 : vector<2x32xf32> to vector<2x1x32xf32>
    tpu.vector_store %arg3[%c0_20, %c2, %c0_21], %41 {strides = array<i32>} : memref<2x8x32xf32, #tpu.memory_space<vmem>>, vector<2x1x32xf32>,
    %42 = vector.extract_strided_slice %16 {offsets = [0, 3, 0], sizes = [2, 1, 32], strides = [1, 1, 1]} : vector<2x8x32xf32> to vector<2x1x32xf32>
    %43 = vector.shape_cast %42 : vector<2x1x32xf32> to vector<2x32xf32>
    %cst_22 = arith.constant dense<0.000000e+00> : vector<2x32xf32>
    %44 = tpu.matmul %38, %4, %cst_22 {dimension_numbers = #tpu.dot_dimension_numbers<[1], [0], [0], [1], [0, 0, 1, 1], [], []>} : vector<2x32xf32>, vector<32x32xf32>, vector<2x32xf32> -> vector<2x32xf32>
    %45 = arith.addf %43, %44 : vector<2x32xf32>
    %46 = math.tanh %45 : vector<2x32xf32>
    %c0_23 = arith.constant 0 : index
    %c3 = arith.constant 3 : index
    %c0_24 = arith.constant 0 : index
    %47 = vector.load %arg3[%c0_23, %c3, %c0_24] : memref<2x8x32xf32, #tpu.memory_space<vmem>>, vector<2x1x32xf32>
    %48 = vector.shape_cast %47 : vector<2x1x32xf32> to vector<2x32xf32>
    %49 = vector.shape_cast %46 : vector<2x32xf32> to vector<2x1x32xf32>
    tpu.vector_store %arg3[%c0_23, %c3, %c0_24], %49 {strides = array<i32>} : memref<2x8x32xf32, #tpu.memory_space<vmem>>, vector<2x1x32xf32>,
    %50 = vector.extract_strided_slice %16 {offsets = [0, 4, 0], sizes = [2, 1, 32], strides = [1, 1, 1]} : vector<2x8x32xf32> to vector<2x1x32xf32>
    %51 = vector.shape_cast %50 : vector<2x1x32xf32> to vector<2x32xf32>
    %cst_25 = arith.constant dense<0.000000e+00> : vector<2x32xf32>
    %52 = tpu.matmul %46, %4, %cst_25 {dimension_numbers = #tpu.dot_dimension_numbers<[1], [0], [0], [1], [0, 0, 1, 1], [], []>} : vector<2x32xf32>, vector<32x32xf32>, vector<2x32xf32> -> vector<2x32xf32>
    %53 = arith.addf %51, %52 : vector<2x32xf32>
    %54 = math.tanh %53 : vector<2x32xf32>
    %c0_26 = arith.constant 0 : index
    %c4 = arith.constant 4 : index
    %c0_27 = arith.constant 0 : index
    %55 = vector.load %arg3[%c0_26, %c4, %c0_27] : memref<2x8x32xf32, #tpu.memory_space<vmem>>, vector<2x1x32xf32>
    %56 = vector.shape_cast %55 : vector<2x1x32xf32> to vector<2x32xf32>
    %57 = vector.shape_cast %54 : vector<2x32xf32> to vector<2x1x32xf32>
    tpu.vector_store %arg3[%c0_26, %c4, %c0_27], %57 {strides = array<i32>} : memref<2x8x32xf32, #tpu.memory_space<vmem>>, vector<2x1x32xf32>,
    %58 = vector.extract_strided_slice %16 {offsets = [0, 5, 0], sizes = [2, 1, 32], strides = [1, 1, 1]} : vector<2x8x32xf32> to vector<2x1x32xf32>
    %59 = vector.shape_cast %58 : vector<2x1x32xf32> to vector<2x32xf32>
    %cst_28 = arith.constant dense<0.000000e+00> : vector<2x32xf32>
    %60 = tpu.matmul %54, %4, %cst_28 {dimension_numbers = #tpu.dot_dimension_numbers<[1], [0], [0], [1], [0, 0, 1, 1], [], []>} : vector<2x32xf32>, vector<32x32xf32>, vector<2x32xf32> -> vector<2x32xf32>
    %61 = arith.addf %59, %60 : vector<2x32xf32>
    %62 = math.tanh %61 : vector<2x32xf32>
    %c0_29 = arith.constant 0 : index
    %c5 = arith.constant 5 : index
    %c0_30 = arith.constant 0 : index
    %63 = vector.load %arg3[%c0_29, %c5, %c0_30] : memref<2x8x32xf32, #tpu.memory_space<vmem>>, vector<2x1x32xf32>
    %64 = vector.shape_cast %63 : vector<2x1x32xf32> to vector<2x32xf32>
    %65 = vector.shape_cast %62 : vector<2x32xf32> to vector<2x1x32xf32>
    tpu.vector_store %arg3[%c0_29, %c5, %c0_30], %65 {strides = array<i32>} : memref<2x8x32xf32, #tpu.memory_space<vmem>>, vector<2x1x32xf32>,
    %66 = vector.extract_strided_slice %16 {offsets = [0, 6, 0], sizes = [2, 1, 32], strides = [1, 1, 1]} : vector<2x8x32xf32> to vector<2x1x32xf32>
    %67 = vector.shape_cast %66 : vector<2x1x32xf32> to vector<2x32xf32>
    %cst_31 = arith.constant dense<0.000000e+00> : vector<2x32xf32>
    %68 = tpu.matmul %62, %4, %cst_31 {dimension_numbers = #tpu.dot_dimension_numbers<[1], [0], [0], [1], [0, 0, 1, 1], [], []>} : vector<2x32xf32>, vector<32x32xf32>, vector<2x32xf32> -> vector<2x32xf32>
    %69 = arith.addf %67, %68 : vector<2x32xf32>
    %70 = math.tanh %69 : vector<2x32xf32>
    %c0_32 = arith.constant 0 : index
    %c6 = arith.constant 6 : index
    %c0_33 = arith.constant 0 : index
    %71 = vector.load %arg3[%c0_32, %c6, %c0_33] : memref<2x8x32xf32, #tpu.memory_space<vmem>>, vector<2x1x32xf32>
    %72 = vector.shape_cast %71 : vector<2x1x32xf32> to vector<2x32xf32>
    %73 = vector.shape_cast %70 : vector<2x32xf32> to vector<2x1x32xf32>
    tpu.vector_store %arg3[%c0_32, %c6, %c0_33], %73 {strides = array<i32>} : memref<2x8x32xf32, #tpu.memory_space<vmem>>, vector<2x1x32xf32>,
    %74 = vector.extract_strided_slice %16 {offsets = [0, 7, 0], sizes = [2, 1, 32], strides = [1, 1, 1]} : vector<2x8x32xf32> to vector<2x1x32xf32>
    %75 = vector.shape_cast %74 : vector<2x1x32xf32> to vector<2x32xf32>
    %cst_34 = arith.constant dense<0.000000e+00> : vector<2x32xf32>
    %76 = tpu.matmul %70, %4, %cst_34 {dimension_numbers = #tpu.dot_dimension_numbers<[1], [0], [0], [1], [0, 0, 1, 1], [], []>} : vector<2x32xf32>, vector<32x32xf32>, vector<2x32xf32> -> vector<2x32xf32>
    %77 = arith.addf %75, %76 : vector<2x32xf32>
    %78 = math.tanh %77 : vector<2x32xf32>
    %c0_35 = arith.constant 0 : index
    %c7 = arith.constant 7 : index
    %c0_36 = arith.constant 0 : index
    %79 = vector.load %arg3[%c0_35, %c7, %c0_36] : memref<2x8x32xf32, #tpu.memory_space<vmem>>, vector<2x1x32xf32>
    %80 = vector.shape_cast %79 : vector<2x1x32xf32> to vector<2x32xf32>
    %81 = vector.shape_cast %78 : vector<2x32xf32> to vector<2x1x32xf32>
    tpu.vector_store %arg3[%c0_35, %c7, %c0_36], %81 {strides = array<i32>} : memref<2x8x32xf32, #tpu.memory_space<vmem>>, vector<2x1x32xf32>,
    %82 = vector.extract_strided_slice %0 {offsets = [0, 16], sizes = [16, 1], strides = [1, 1]} : vector<16x24xf32> to vector<16x1xf32>
    %c0_37 = arith.constant 0 : index
    %c0_38 = arith.constant 0 : index
    %c0_39 = arith.constant 0 : index
    %83 = vector.load %arg3[%c0_37, %c0_38, %c0_39] : memref<2x8x32xf32, #tpu.memory_space<vmem>>, vector<1x8x32xf32>
    %84 = vector.shape_cast %83 : vector<1x8x32xf32> to vector<8x32xf32>
    %85 = vector.extract_strided_slice %82 {offsets = [0, 0], sizes = [8, 1], strides = [1, 1]} : vector<16x1xf32> to vector<8x1xf32>
    %86 = vector.broadcast %85 : vector<8x1xf32> to vector<8x32xf32>
    %87 = arith.mulf %84, %86 : vector<8x32xf32>
    %88 = tpu.transpose %87, [1, 0] : vector<8x32xf32> -> vector<32x8xf32>
    %cst_40 = arith.constant dense<0.000000e+00> : vector<4x8xf32>
    %89 = tpu.matmul %6, %88, %cst_40 {dimension_numbers = #tpu.dot_dimension_numbers<[1], [0], [0], [1], [0, 0, 1, 1], [], []>} : vector<4x32xf32>, vector<32x8xf32>, vector<4x8xf32> -> vector<4x8xf32>
    %90 = vector.broadcast %7 : vector<4x1xf32> to vector<4x8xf32>
    %91 = arith.addf %89, %90 : vector<4x8xf32>
    %c0_41 = arith.constant 0 : index
    %c0_42 = arith.constant 0 : index
    %c0_43 = arith.constant 0 : index
    %92 = vector.load %arg2[%c0_41, %c0_42, %c0_43] : memref<2x4x8xf32, #tpu.memory_space<vmem>>, vector<1x4x8xf32>
    %93 = vector.shape_cast %92 : vector<1x4x8xf32> to vector<4x8xf32>
    %94 = vector.shape_cast %91 : vector<4x8xf32> to vector<1x4x8xf32>
    tpu.vector_store %arg2[%c0_41, %c0_42, %c0_43], %94 {strides = array<i32>} : memref<2x4x8xf32, #tpu.memory_space<vmem>>, vector<1x4x8xf32>,
    %c1_44 = arith.constant 1 : index
    %c0_45 = arith.constant 0 : index
    %c0_46 = arith.constant 0 : index
    %95 = vector.load %arg3[%c1_44, %c0_45, %c0_46] : memref<2x8x32xf32, #tpu.memory_space<vmem>>, vector<1x8x32xf32>
    %96 = vector.shape_cast %95 : vector<1x8x32xf32> to vector<8x32xf32>
    %97 = vector.extract_strided_slice %82 {offsets = [8, 0], sizes = [8, 1], strides = [1, 1]} : vector<16x1xf32> to vector<8x1xf32>
    %98 = vector.broadcast %97 : vector<8x1xf32> to vector<8x32xf32>
    %99 = arith.mulf %96, %98 : vector<8x32xf32>
    %100 = tpu.transpose %99, [1, 0] : vector<8x32xf32> -> vector<32x8xf32>
    %cst_47 = arith.constant dense<0.000000e+00> : vector<4x8xf32>
    %101 = tpu.matmul %6, %100, %cst_47 {dimension_numbers = #tpu.dot_dimension_numbers<[1], [0], [0], [1], [0, 0, 1, 1], [], []>} : vector<4x32xf32>, vector<32x8xf32>, vector<4x8xf32> -> vector<4x8xf32>
    %102 = vector.broadcast %7 : vector<4x1xf32> to vector<4x8xf32>
    %103 = arith.addf %101, %102 : vector<4x8xf32>
    %c1_48 = arith.constant 1 : index
    %c0_49 = arith.constant 0 : index
    %c0_50 = arith.constant 0 : index
    %104 = vector.load %arg2[%c1_48, %c0_49, %c0_50] : memref<2x4x8xf32, #tpu.memory_space<vmem>>, vector<1x4x8xf32>
    %105 = vector.shape_cast %104 : vector<1x4x8xf32> to vector<4x8xf32>
    %106 = vector.shape_cast %103 : vector<4x8xf32> to vector<1x4x8xf32>
    tpu.vector_store %arg2[%c1_48, %c0_49, %c0_50], %106 {strides = array<i32>} : memref<2x4x8xf32, #tpu.memory_space<vmem>>, vector<1x4x8xf32>,
    return
  }
}

</mosaic_0001>

<llo_original>
// kernel: seq_classifier_forward.1
$region0: #{seq_classifier_forward.1}
  #allocation0 [shape = 'u32[]', space=smem, size = 0x4, offset = 0x4, fixed_abs, tag = 'smem constant byte address 0x4 - core index']
  #allocation1 [shape = 'u32[144,128]{1,0:T(1,128)}', space=vmem, size = 0x12000, scoped, tag = 'internal scratch']
  #allocation2 [shape = 'f32[2,8,32]{2,1,0:T(8,128)}', space=vmem, size = 0x2000, scoped, tag = 'scratch operand']
  %s0 = inlined_call_operand.vmem [shape: f32[16,24], index: 0, kind: input, shape index: {}]
  %s1 = inlined_call_operand.vmem [shape: f32[120,32], index: 1, kind: input, shape index: {}]
  %s2 = inlined_call_operand.hbm [shape: f32[2,4,8], index: 2, kind: output, shape index: {}]
  %s3 = sld [smem:[#allocation0]]
  $region18: #{seq_classifier_forward.1} parent=0
    _
  %s5 = ssub.s32 1, %s3
  %s6 = scalar_select 0, %s5, %s3
  $region1: #{seq_classifier_forward.1} parent=0
    #allocation3 [shape = 'u8[4096]{0}', space=vmem, size = 0x1000, scoped, tag = 'output window, operand 0, single buffered']
    #allocation4 [shape = 's32[1]{0}', space=sflag, size = 0x4, scoped, tag = 'scoped memory for seq_classifier_forward.1']
    %7 = vsyncpa [#allocation4], 0
    // Predicated region
    $region2: #{seq_classifier_forward.1} parent=1 // pred_check
      _
    $region3: #{seq_classifier_forward.1} parent=1 // pred_check_branch
      %9 = sbr.rel (0) target = $region5
    $region4: #{seq_classifier_forward.1} parent=1 // pred_region
      _
    $region5: #{seq_classifier_forward.1} parent=1 // pred_fallthru
      _
    // Predicated region
    $region6: #{seq_classifier_forward.1} parent=1 // pred_check
      _
    $region7: #{seq_classifier_forward.1} parent=1 // pred_check_branch
      %11 = sbr.rel (0) target = $region9
    $region8: #{seq_classifier_forward.1} parent=1 // pred_region
      _
    $region9: #{seq_classifier_forward.1} parent=1 // pred_fallthru
      _
    %v12 = vld [vmem:[%s0] sm:$0xff]
    %v13 = vld [vmem:[%s0 + $0x8] sm:$0xff]
    %v14 = vld [vmem:[%s1] sm:$0xff]
    %v15 = vld [vmem:[%s1 + $0x8] sm:$0xff]
    %v16 = vld [vmem:[%s1 + $0x10] sm:$0xff]
    %v17 = vld [vmem:[%s1 + $0x18] sm:$0x1]
    %v18 = vld [vmem:[%s1 + $0x20] sm:$0xff]
    %v19 = vld [vmem:[%s1 + $0x28] sm:$0xff]
    %v20 = vld [vmem:[%s1 + $0x30] sm:$0xff]
    %v21 = vld [vmem:[%s1 + $0x38] sm:$0xff]
    %v22 = vld [vmem:[%s1 + $0x40] sm:$0xff]
    %v23 = vld [vmem:[%s1 + $0x48] sm:$0xff]
    %v24 = vld [vmem:[%s1 + $0x50] sm:$0xff]
    %v25 = vld [vmem:[%s1 + $0x58] sm:$0xff]
    %v26 = vld [vmem:[%s1 + $0x60] sm:$0x1]
    %v27 = vld [vmem:[%s1 + $0x68] sm:$0xf]
    %v28 = vld [vmem:[%s1 + $0x70] sm:$0xf]
    %v29 = vlaneseq
    %v30 = vshrl.u32 %v29, 7
    %v31 = vsub.s32 0, %v30
    %v32 = vrot.slane %v17, %v31
    %vm33 = vcmask 195584
    %v35 = vsel %vm33, %v12, 0
    %v38 = vsel %vm33, %v13, 0
    %40 = vmatprep.subr.mxu0 0.0
    %41 = vmatpush1.msra.mxu0 0.0
    %42 = vmatprep.subr.mxu0 0.0
    %43 = vmatpush1.msra.mxu0 0.0
    %44 = vmatprep.subr.mxu0 0.0
    %45 = vmatpush1.msra.mxu0 0.0
    %46 = vmatprep.subr.mxu0 0.0
    %47 = vmatpush1.msra.mxu0 0.0
    %48 = vmatprep.subr.mxu0 0.0
    %49 = vmatpush1.msra.mxu0 0.0
    %50 = vmatprep.subr.mxu0 0.0
    %51 = vmatpush1.msra.mxu0 0.0
    %52 = vmatprep.subr.mxu0 0.0
    %53 = vmatpush1.msra.mxu0 0.0
    %54 = vmatprep.subr.mxu0 0.0
    %55 = vmatpush1.msra.mxu0 0.0
    %56 = vmatprep.subr.mxu0 0.0
    %57 = vmatpush1.msra.mxu0 0.0
    %58 = vmatprep.subr.mxu0 0.0
    %59 = vmatpush1.msra.mxu0 0.0
    %60 = vmatprep.subr.mxu0 0.0
    %61 = vmatpush1.msra.mxu0 0.0
    %62 = vmatprep.subr.mxu0 0.0
    %63 = vmatpush1.msra.mxu0 0.0
    %64 = vmatprep.subr.mxu0 0.0
    %65 = vmatpush1.msra.mxu0 0.0
    %66 = vmatprep.subr.mxu0 0.0
    %67 = vmatpush1.msra.mxu0 %v16
    %68 = vmatprep.subr.mxu0 0.0
    %69 = vmatpush1.msra.mxu0 %v15
    %70 = vmatprep.subr.mxu0 0.0
    %71 = vmatpush1.msra.mxu0 %v14
    %72 = vmatprep.subr.mxu0 0.0
    %73 = vmatpush2.msra.mxu0 0.0
    %74 = vmatprep.subr.mxu0 0.0
    %75 = vmatpush2.msra.mxu0 0.0
    %76 = vmatprep.subr.mxu0 0.0
    %77 = vmatpush2.msra.mxu0 0.0
    %78 = vmatprep.subr.mxu0 0.0
    %79 = vmatpush2.msra.mxu0 0.0
    %80 = vmatprep.subr.mxu0 0.0
    %81 = vmatpush2.msra.mxu0 0.0
    %82 = vmatprep.subr.mxu0 0.0
    %83 = vmatpush2.msra.mxu0 0.0
    %84 = vmatprep.subr.mxu0 0.0
    %85 = vmatpush2.msra.mxu0 0.0
    %86 = vmatprep.subr.mxu0 0.0
    %87 = vmatpush2.msra.mxu0 0.0
    %88 = vmatprep.subr.mxu0 0.0
    %89 = vmatpush2.msra.mxu0 0.0
    %90 = vmatprep.subr.mxu0 0.0
    %91 = vmatpush2.msra.mxu0 0.0
    %92 = vmatprep.subr.mxu0 0.0
    %93 = vmatpush2.msra.mxu0 0.0
    %94 = vmatprep.subr.mxu0 0.0
    %95 = vmatpush2.msra.mxu0 0.0
    %96 = vmatprep.subr.mxu0 0.0
    %97 = vmatpush2.msra.mxu0 0.0
    %98 = vmatprep.subr.mxu0 0.0
    %99 = vmatpush2.msra.mxu0 0.0
    %100 = vmatprep.subr.mxu0 0.0
    %101 = vmatpush2.msra.mxu0 0.0
    %102 = vmatprep.subr.mxu0 0.0
    %103 = vmatpush2.msra.mxu0 0.0
    %104 = vmatprep.mubr.f32.mxu0 0.0
    %105 = vmatmul.mubr.f32.gmra.mxu0 %v35
    %v106 = vpop.f32.mrf.mxu0
    %v107 = vadd.f32 %v32, %v106
    %v108 = vpop.f32.mrf.mxu0
    %109 = vmatprep.mubr.f32.mxu0 0.0
    %110 = vmatmul.mubr.f32.gmra.mxu0 %v38
    %v111 = vpop.f32.mrf.mxu0
    %v112 = vadd.f32 %v32, %v111
    %v113 = vpop.f32.mrf.mxu0
    %114 = vdwg.mxu0
    %v115 = vmax.f32 %v107, 0.0
    %v116 = vmax.f32 %v112, 0.0
    %v117 = vlaneseq
    %v118 = vshrl.u32 %v117, 7
    %v119 = vsub.s32 0, %v118
    %v120 = vrot.slane %v26, %v119
    %vm121 = vcmask 261120
    %v123 = vsel %vm121, %v115, 0
    %v126 = vsel %vm121, %v116, 0
    %128 = vmatprep.subr.mxu0 0.0
    %129 = vmatpush1.msra.mxu0 0.0
    %130 = vmatprep.subr.mxu0 0.0
    %131 = vmatpush1.msra.mxu0 0.0
    %132 = vmatprep.subr.mxu0 0.0
    %133 = vmatpush1.msra.mxu0 0.0
    %134 = vmatprep.subr.mxu0 0.0
    %135 = vmatpush1.msra.mxu0 0.0
    %136 = vmatprep.subr.mxu0 0.0
    %137 = vmatpush1.msra.mxu0 0.0
    %138 = vmatprep.subr.mxu0 0.0
    %139 = vmatpush1.msra.mxu0 0.0
    %140 = vmatprep.subr.mxu0 0.0
    %141 = vmatpush1.msra.mxu0 0.0
    %142 = vmatprep.subr.mxu0 0.0
    %143 = vmatpush1.msra.mxu0 0.0
    %144 = vmatprep.subr.mxu0 0.0
    %145 = vmatpush1.msra.mxu0 0.0
    %146 = vmatprep.subr.mxu0 0.0
    %147 = vmatpush1.msra.mxu0 0.0
    %148 = vmatprep.subr.mxu0 0.0
    %149 = vmatpush1.msra.mxu0 0.0
    %150 = vmatprep.subr.mxu0 0.0
    %151 = vmatpush1.msra.mxu0 0.0
    %152 = vmatprep.subr.mxu0 0.0
    %153 = vmatpush1.msra.mxu0 %v21
    %154 = vmatprep.subr.mxu0 0.0
    %155 = vmatpush1.msra.mxu0 %v20
    %156 = vmatprep.subr.mxu0 0.0
    %157 = vmatpush1.msra.mxu0 %v19
    %158 = vmatprep.subr.mxu0 0.0
    %159 = vmatpush1.msra.mxu0 %v18
    %160 = vmatprep.subr.mxu0 0.0
    %161 = vmatpush2.msra.mxu0 0.0
    %162 = vmatprep.subr.mxu0 0.0
    %163 = vmatpush2.msra.mxu0 0.0
    %164 = vmatprep.subr.mxu0 0.0
    %165 = vmatpush2.msra.mxu0 0.0
    %166 = vmatprep.subr.mxu0 0.0
    %167 = vmatpush2.msra.mxu0 0.0
    %168 = vmatprep.subr.mxu0 0.0
    %169 = vmatpush2.msra.mxu0 0.0
    %170 = vmatprep.subr.mxu0 0.0
    %171 = vmatpush2.msra.mxu0 0.0
    %172 = vmatprep.subr.mxu0 0.0
    %173 = vmatpush2.msra.mxu0 0.0
    %174 = vmatprep.subr.mxu0 0.0
    %175 = vmatpush2.msra.mxu0 0.0
    %176 = vmatprep.subr.mxu0 0.0
    %177 = vmatpush2.msra.mxu0 0.0
    %178 = vmatprep.subr.mxu0 0.0
    %179 = vmatpush2.msra.mxu0 0.0
    %180 = vmatprep.subr.mxu0 0.0
    %181 = vmatpush2.msra.mxu0 0.0
    %182 = vmatprep.subr.mxu0 0.0
    %183 = vmatpush2.msra.mxu0 0.0
    %184 = vmatprep.subr.mxu0 0.0
    %185 = vmatpush2.msra.mxu0 0.0
    %186 = vmatprep.subr.mxu0 0.0
    %187 = vmatpush2.msra.mxu0 0.0
    %188 = vmatprep.subr.mxu0 0.0
    %189 = vmatpush2.msra.mxu0 0.0
    %190 = vmatprep.subr.mxu0 0.0
    %191 = vmatpush2.msra.mxu0 0.0
    %192 = vmatprep.mubr.f32.mxu0 0.0
    %193 = vmatmul.mubr.f32.gmra.mxu0 %v123
    %v194 = vpop.f32.mrf.mxu0
    %v195 = vadd.f32 %v120, %v194
    %v196 = vpop.f32.mrf.mxu0
    %197 = vmatprep.mubr.f32.mxu0 0.0
    %198 = vmatmul.mubr.f32.gmra.mxu0 %v126
    %v199 = vpop.f32.mrf.mxu0
    %v200 = vadd.f32 %v120, %v199
    %v201 = vpop.f32.mrf.mxu0
    %202 = vdwg.mxu0
    %v204 = vsel %vm121, 0.0, 0
    %206 = vmatprep.subr.mxu0 0.0
    %207 = vmatpush1.msra.mxu0 0.0
    %208 = vmatprep.subr.mxu0 0.0
    %209 = vmatpush1.msra.mxu0 0.0
    %210 = vmatprep.subr.mxu0 0.0
    %211 = vmatpush1.msra.mxu0 0.0
    %212 = vmatprep.subr.mxu0 0.0
    %213 = vmatpush1.msra.mxu0 0.0
    %214 = vmatprep.subr.mxu0 0.0
    %215 = vmatpush1.msra.mxu0 0.0
    %216 = vmatprep.subr.mxu0 0.0
    %217 = vmatpush1.msra.mxu0 0.0
    %218 = vmatprep.subr.mxu0 0.0
    %219 = vmatpush1.msra.mxu0 0.0
    %220 = vmatprep.subr.mxu0 0.0
    %221 = vmatpush1.msra.mxu0 0.0
    %222 = vmatprep.subr.mxu0 0.0
    %223 = vmatpush1.msra.mxu0 0.0
    %224 = vmatprep.subr.mxu0 0.0
    %225 = vmatpush1.msra.mxu0 0.0
    %226 = vmatprep.subr.mxu0 0.0
    %227 = vmatpush1.msra.mxu0 0.0
    %228 = vmatprep.subr.mxu0 0.0
    %229 = vmatpush1.msra.mxu0 0.0
    %230 = vmatprep.subr.mxu0 0.0
    %231 = vmatpush1.msra.mxu0 %v25
    %232 = vmatprep.subr.mxu0 0.0
    %233 = vmatpush1.msra.mxu0 %v24
    %234 = vmatprep.subr.mxu0 0.0
    %235 = vmatpush1.msra.mxu0 %v23
    %236 = vmatprep.subr.mxu0 0.0
    %237 = vmatpush1.msra.mxu0 %v22
    %238 = vmatprep.subr.mxu0 0.0
    %239 = vmatpush2.msra.mxu0 0.0
    %240 = vmatprep.subr.mxu0 0.0
    %241 = vmatpush2.msra.mxu0 0.0
    %242 = vmatprep.subr.mxu0 0.0
    %243 = vmatpush2.msra.mxu0 0.0
    %244 = vmatprep.subr.mxu0 0.0
    %245 = vmatpush2.msra.mxu0 0.0
    %246 = vmatprep.subr.mxu0 0.0
    %247 = vmatpush2.msra.mxu0 0.0
    %248 = vmatprep.subr.mxu0 0.0
    %249 = vmatpush2.msra.mxu0 0.0
    %250 = vmatprep.subr.mxu0 0.0
    %251 = vmatpush2.msra.mxu0 0.0
    %252 = vmatprep.subr.mxu0 0.0
    %253 = vmatpush2.msra.mxu0 0.0
    %254 = vmatprep.subr.mxu0 0.0
    %255 = vmatpush2.msra.mxu0 0.0
    %256 = vmatprep.subr.mxu0 0.0
    %257 = vmatpush2.msra.mxu0 0.0
    %258 = vmatprep.subr.mxu0 0.0
    %259 = vmatpush2.msra.mxu0 0.0
    %260 = vmatprep.subr.mxu0 0.0
    %261 = vmatpush2.msra.mxu0 0.0
    %262 = vmatprep.subr.mxu0 0.0
    %263 = vmatpush2.msra.mxu0 0.0
    %264 = vmatprep.subr.mxu0 0.0
    %265 = vmatpush2.msra.mxu0 0.0
    %266 = vmatprep.subr.mxu0 0.0
    %267 = vmatpush2.msra.mxu0 0.0
    %268 = vmatprep.subr.mxu0 0.0
    %269 = vmatpush2.msra.mxu0 0.0
    %270 = vmatprep.mubr.f32.mxu0 0.0
    %271 = vmatmul.mubr.f32.gmra.mxu0 %v204
    %v272 = vpop.f32.mrf.mxu0
    %v273 = vadd.f32 0.0, %v272
    %v274 = vpop.f32.mrf.mxu0
    %275 = vdwg.mxu0
    %v277 = vrot.slane %v273, 1
    %v280 = vadd.f32 %v195, %v273
    %v281 = vadd.f32 %v200, %v277
    %v282 = vtanh.pop %v280
    %v283 = vtanh.pop %v281
    %vm284 = vcmask 253952
    %285 = vst.msk [vmem:[#allocation2] sm:$0x1] %vm284, %v282
    %286 = vst.msk [vmem:[#allocation2 + $0x8] sm:$0x1] %vm284, %v283
    %v289 = vrot.slane %v283, 7
    %vm290 = vcmask 1041409
    %v291 = vsel %vm290, %v289, %v282
    %v292 = vsel %vm121, %v291, 0
    %294 = vmatprep.subr.mxu0 0.0
    %295 = vmatpush1.msra.mxu0 0.0
    %296 = vmatprep.subr.mxu0 0.0
    %297 = vmatpush1.msra.mxu0 0.0
    %298 = vmatprep.subr.mxu0 0.0
    %299 = vmatpush1.msra.mxu0 0.0
    %300 = vmatprep.subr.mxu0 0.0
    %301 = vmatpush1.msra.mxu0 0.0
    %302 = vmatprep.subr.mxu0 0.0
    %303 = vmatpush1.msra.mxu0 0.0
    %304 = vmatprep.subr.mxu0 0.0
    %305 = vmatpush1.msra.mxu0 0.0
    %306 = vmatprep.subr.mxu0 0.0
    %307 = vmatpush1.msra.mxu0 0.0
    %308 = vmatprep.subr.mxu0 0.0
    %309 = vmatpush1.msra.mxu0 0.0
    %310 = vmatprep.subr.mxu0 0.0
    %311 = vmatpush1.msra.mxu0 0.0
    %312 = vmatprep.subr.mxu0 0.0
    %313 = vmatpush1.msra.mxu0 0.0
    %314 = vmatprep.subr.mxu0 0.0
    %315 = vmatpush1.msra.mxu0 0.0
    %316 = vmatprep.subr.mxu0 0.0
    %317 = vmatpush1.msra.mxu0 0.0
    %318 = vmatprep.subr.mxu0 0.0
    %319 = vmatpush1.msra.mxu0 %v25
    %320 = vmatprep.subr.mxu0 0.0
    %321 = vmatpush1.msra.mxu0 %v24
    %322 = vmatprep.subr.mxu0 0.0
    %323 = vmatpush1.msra.mxu0 %v23
    %324 = vmatprep.subr.mxu0 0.0
    %325 = vmatpush1.msra.mxu0 %v22
    %326 = vmatprep.subr.mxu0 0.0
    %327 = vmatpush2.msra.mxu0 0.0
    %328 = vmatprep.subr.mxu0 0.0
    %329 = vmatpush2.msra.mxu0 0.0
    %330 = vmatprep.subr.mxu0 0.0
    %331 = vmatpush2.msra.mxu0 0.0
    %332 = vmatprep.subr.mxu0 0.0
    %333 = vmatpush2.msra.mxu0 0.0
    %334 = vmatprep.subr.mxu0 0.0
    %335 = vmatpush2.msra.mxu0 0.0
    %336 = vmatprep.subr.mxu0 0.0
    %337 = vmatpush2.msra.mxu0 0.0
    %338 = vmatprep.subr.mxu0 0.0
    %339 = vmatpush2.msra.mxu0 0.0
    %340 = vmatprep.subr.mxu0 0.0
    %341 = vmatpush2.msra.mxu0 0.0
    %342 = vmatprep.subr.mxu0 0.0
    %343 = vmatpush2.msra.mxu0 0.0
    %344 = vmatprep.subr.mxu0 0.0
    %345 = vmatpush2.msra.mxu0 0.0
    %346 = vmatprep.subr.mxu0 0.0
    %347 = vmatpush2.msra.mxu0 0.0
    %348 = vmatprep.subr.mxu0 0.0
    %349 = vmatpush2.msra.mxu0 0.0
    %350 = vmatprep.subr.mxu0 0.0
    %351 = vmatpush2.msra.mxu0 0.0
    %352 = vmatprep.subr.mxu0 0.0
    %353 = vmatpush2.msra.mxu0 0.0
    %354 = vmatprep.subr.mxu0 0.0
    %355 = vmatpush2.msra.mxu0 0.0
    %356 = vmatprep.subr.mxu0 0.0
    %357 = vmatpush2.msra.mxu0 0.0
    %358 = vmatprep.mubr.f32.mxu0 0.0
    %359 = vmatmul.mubr.f32.gmra.mxu0 %v292
    %v360 = vpop.f32.mrf.mxu0
    %v361 = vadd.f32 0.0, %v360
    %v362 = vpop.f32.mrf.mxu0
    %363 = vdwg.mxu0
    %v365 = vrot.slane %v361, 7
    %v368 = vadd.f32 %v195, %v365
    %v369 = vadd.f32 %v200, %v361
    %v370 = vtanh.pop %v368
    %v371 = vtanh.pop %v369
    %vm372 = vcmask 254977
    %373 = vst.msk [vmem:[#allocation2] sm:$0x2] %vm372, %v370
    %374 = vst.msk [vmem:[#allocation2 + $0x8] sm:$0x2] %vm372, %v371
    %v377 = vrot.slane %v370, 1
    %v378 = vsel %vm290, %v371, %v377
    %v379 = vsel %vm121, %v378, 0
    %381 = vmatprep.subr.mxu0 0.0
    %382 = vmatpush1.msra.mxu0 0.0
    %383 = vmatprep.subr.mxu0 0.0
    %384 = vmatpush1.msra.mxu0 0.0
    %385 = vmatprep.subr.mxu0 0.0
    %386 = vmatpush1.msra.mxu0 0.0
    %387 = vmatprep.subr.mxu0 0.0
    %388 = vmatpush1.msra.mxu0 0.0
    %389 = vmatprep.subr.mxu0 0.0
    %390 = vmatpush1.msra.mxu0 0.0
    %391 = vmatprep.subr.mxu0 0.0
    %392 = vmatpush1.msra.mxu0 0.0
    %393 = vmatprep.subr.mxu0 0.0
    %394 = vmatpush1.msra.mxu0 0.0
    %395 = vmatprep.subr.mxu0 0.0
    %396 = vmatpush1.msra.mxu0 0.0
    %397 = vmatprep.subr.mxu0 0.0
    %398 = vmatpush1.msra.mxu0 0.0
    %399 = vmatprep.subr.mxu0 0.0
    %400 = vmatpush1.msra.mxu0 0.0
    %401 = vmatprep.subr.mxu0 0.0
    %402 = vmatpush1.msra.mxu0 0.0
    %403 = vmatprep.subr.mxu0 0.0
    %404 = vmatpush1.msra.mxu0 0.0
    %405 = vmatprep.subr.mxu0 0.0
    %406 = vmatpush1.msra.mxu0 %v25
    %407 = vmatprep.subr.mxu0 0.0
    %408 = vmatpush1.msra.mxu0 %v24
    %409 = vmatprep.subr.mxu0 0.0
    %410 = vmatpush1.msra.mxu0 %v23
    %411 = vmatprep.subr.mxu0 0.0
    %412 = vmatpush1.msra.mxu0 %v22
    %413 = vmatprep.subr.mxu0 0.0
    %414 = vmatpush2.msra.mxu0 0.0
    %415 = vmatprep.subr.mxu0 0.0
    %416 = vmatpush2.msra.mxu0 0.0
    %417 = vmatprep.subr.mxu0 0.0
    %418 = vmatpush2.msra.mxu0 0.0
    %419 = vmatprep.subr.mxu0 0.0
    %420 = vmatpush2.msra.mxu0 0.0
    %421 = vmatprep.subr.mxu0 0.0
    %422 = vmatpush2.msra.mxu0 0.0
    %423 = vmatprep.subr.mxu0 0.0
    %424 = vmatpush2.msra.mxu0 0.0
    %425 = vmatprep.subr.mxu0 0.0
    %426 = vmatpush2.msra.mxu0 0.0
    %427 = vmatprep.subr.mxu0 0.0
    %428 = vmatpush2.msra.mxu0 0.0
    %429 = vmatprep.subr.mxu0 0.0
    %430 = vmatpush2.msra.mxu0 0.0
    %431 = vmatprep.subr.mxu0 0.0
    %432 = vmatpush2.msra.mxu0 0.0
    %433 = vmatprep.subr.mxu0 0.0
    %434 = vmatpush2.msra.mxu0 0.0
    %435 = vmatprep.subr.mxu0 0.0
    %436 = vmatpush2.msra.mxu0 0.0
    %437 = vmatprep.subr.mxu0 0.0
    %438 = vmatpush2.msra.mxu0 0.0
    %439 = vmatprep.subr.mxu0 0.0
    %440 = vmatpush2.msra.mxu0 0.0
    %441 = vmatprep.subr.mxu0 0.0
    %442 = vmatpush2.msra.mxu0 0.0
    %443 = vmatprep.subr.mxu0 0.0
    %444 = vmatpush2.msra.mxu0 0.0
    %445 = vmatprep.mubr.f32.mxu0 0.0
    %446 = vmatmul.mubr.f32.gmra.mxu0 %v379
    %v447 = vpop.f32.mrf.mxu0
    %v448 = vadd.f32 0.0, %v447
    %v449 = vpop.f32.mrf.mxu0
    %450 = vdwg.mxu0
    %v452 = vrot.slane %v448, 6
    %v453 = vrot.slane %v448, 7
    %v456 = vadd.f32 %v195, %v452
    %v457 = vadd.f32 %v200, %v453
    %v458 = vtanh.pop %v456
    %v459 = vtanh.pop %v457
    %vm460 = vcmask 256002
    %461 = vst.msk [vmem:[#allocation2] sm:$0x4] %vm460, %v458
    %462 = vst.msk [vmem:[#allocation2 + $0x8] sm:$0x4] %vm460, %v459
    %v465 = vrot.slane %v458, 2
    %v466 = vrot.slane %v459, 1
    %v467 = vsel %vm290, %v466, %v465
    %v468 = vsel %vm121, %v467, 0
    %470 = vmatprep.subr.mxu0 0.0
    %471 = vmatpush1.msra.mxu0 0.0
    %472 = vmatprep.subr.mxu0 0.0
    %473 = vmatpush1.msra.mxu0 0.0
    %474 = vmatprep.subr.mxu0 0.0
    %475 = vmatpush1.msra.mxu0 0.0
    %476 = vmatprep.subr.mxu0 0.0
    %477 = vmatpush1.msra.mxu0 0.0
    %478 = vmatprep.subr.mxu0 0.0
    %479 = vmatpush1.msra.mxu0 0.0
    %480 = vmatprep.subr.mxu0 0.0
    %481 = vmatpush1.msra.mxu0 0.0
    %482 = vmatprep.subr.mxu0 0.0
    %483 = vmatpush1.msra.mxu0 0.0
    %484 = vmatprep.subr.mxu0 0.0
    %485 = vmatpush1.msra.mxu0 0.0
    %486 = vmatprep.subr.mxu0 0.0
    %487 = vmatpush1.msra.mxu0 0.0
    %488 = vmatprep.subr.mxu0 0.0
    %489 = vmatpush1.msra.mxu0 0.0
    %490 = vmatprep.subr.mxu0 0.0
    %491 = vmatpush1.msra.mxu0 0.0
    %492 = vmatprep.subr.mxu0 0.0
    %493 = vmatpush1.msra.mxu0 0.0
    %494 = vmatprep.subr.mxu0 0.0
    %495 = vmatpush1.msra.mxu0 %v25
    %496 = vmatprep.subr.mxu0 0.0
    %497 = vmatpush1.msra.mxu0 %v24
    %498 = vmatprep.subr.mxu0 0.0
    %499 = vmatpush1.msra.mxu0 %v23
    %500 = vmatprep.subr.mxu0 0.0
    %501 = vmatpush1.msra.mxu0 %v22
    %502 = vmatprep.subr.mxu0 0.0
    %503 = vmatpush2.msra.mxu0 0.0
    %504 = vmatprep.subr.mxu0 0.0
    %505 = vmatpush2.msra.mxu0 0.0
    %506 = vmatprep.subr.mxu0 0.0
    %507 = vmatpush2.msra.mxu0 0.0
    %508 = vmatprep.subr.mxu0 0.0
    %509 = vmatpush2.msra.mxu0 0.0
    %510 = vmatprep.subr.mxu0 0.0
    %511 = vmatpush2.msra.mxu0 0.0
    %512 = vmatprep.subr.mxu0 0.0
    %513 = vmatpush2.msra.mxu0 0.0
    %514 = vmatprep.subr.mxu0 0.0
    %515 = vmatpush2.msra.mxu0 0.0
    %516 = vmatprep.subr.mxu0 0.0
    %517 = vmatpush2.msra.mxu0 0.0
    %518 = vmatprep.subr.mxu0 0.0
    %519 = vmatpush2.msra.mxu0 0.0
    %520 = vmatprep.subr.mxu0 0.0
    %521 = vmatpush2.msra.mxu0 0.0
    %522 = vmatprep.subr.mxu0 0.0
    %523 = vmatpush2.msra.mxu0 0.0
    %524 = vmatprep.subr.mxu0 0.0
    %525 = vmatpush2.msra.mxu0 0.0
    %526 = vmatprep.subr.mxu0 0.0
    %527 = vmatpush2.msra.mxu0 0.0
    %528 = vmatprep.subr.mxu0 0.0
    %529 = vmatpush2.msra.mxu0 0.0
    %530 = vmatprep.subr.mxu0 0.0
    %531 = vmatpush2.msra.mxu0 0.0
    %532 = vmatprep.subr.mxu0 0.0
    %533 = vmatpush2.msra.mxu0 0.0
    %534 = vmatprep.mubr.f32.mxu0 0.0
    %535 = vmatmul.mubr.f32.gmra.mxu0 %v468
    %v536 = vpop.f32.mrf.mxu0
    %v537 = vadd.f32 0.0, %v536
    %v538 = vpop.f32.mrf.mxu0
    %539 = vdwg.mxu0
    %v541 = vrot.slane %v537, 5
    %v542 = vrot.slane %v537, 6
    %v545 = vadd.f32 %v195, %v541
    %v546 = vadd.f32 %v200, %v542
    %v547 = vtanh.pop %v545
    %v548 = vtanh.pop %v546
    %vm549 = vcmask 257027
    %550 = vst.msk [vmem:[#allocation2] sm:$0x8] %vm549, %v547
    %551 = vst.msk [vmem:[#allocation2 + $0x8] sm:$0x8] %vm549, %v548
    %v554 = vrot.slane %v547, 3
    %v555 = vrot.slane %v548, 2
    %v556 = vsel %vm290, %v555, %v554
    %v557 = vsel %vm121, %v556, 0
    %559 = vmatprep.subr.mxu0 0.0
    %560 = vmatpush1.msra.mxu0 0.0
    %561 = vmatprep.subr.mxu0 0.0
    %562 = vmatpush1.msra.mxu0 0.0
    %563 = vmatprep.subr.mxu0 0.0
    %564 = vmatpush1.msra.mxu0 0.0
    %565 = vmatprep.subr.mxu0 0.0
    %566 = vmatpush1.msra.mxu0 0.0
    %567 = vmatprep.subr.mxu0 0.0
    %568 = vmatpush1.msra.mxu0 0.0
    %569 = vmatprep.subr.mxu0 0.0
    %570 = vmatpush1.msra.mxu0 0.0
    %571 = vmatprep.subr.mxu0 0.0
    %572 = vmatpush1.msra.mxu0 0.0
    %573 = vmatprep.subr.mxu0 0.0
    %574 = vmatpush1.msra.mxu0 0.0
    %575 = vmatprep.subr.mxu0 0.0
    %576 = vmatpush1.msra.mxu0 0.0
    %577 = vmatprep.subr.mxu0 0.0
    %578 = vmatpush1.msra.mxu0 0.0
    %579 = vmatprep.subr.mxu0 0.0
    %580 = vmatpush1.msra.mxu0 0.0
    %581 = vmatprep.subr.mxu0 0.0
    %582 = vmatpush1.msra.mxu0 0.0
    %583 = vmatprep.subr.mxu0 0.0
    %584 = vmatpush1.msra.mxu0 %v25
    %585 = vmatprep.subr.mxu0 0.0
    %586 = vmatpush1.msra.mxu0 %v24
    %587 = vmatprep.subr.mxu0 0.0
    %588 = vmatpush1.msra.mxu0 %v23
    %589 = vmatprep.subr.mxu0 0.0
    %590 = vmatpush1.msra.mxu0 %v22
    %591 = vmatprep.subr.mxu0 0.0
    %592 = vmatpush2.msra.mxu0 0.0
    %593 = vmatprep.subr.mxu0 0.0
    %594 = vmatpush2.msra.mxu0 0.0
    %595 = vmatprep.subr.mxu0 0.0
    %596 = vmatpush2.msra.mxu0 0.0
    %597 = vmatprep.subr.mxu0 0.0
    %598 = vmatpush2.msra.mxu0 0.0
    %599 = vmatprep.subr.mxu0 0.0
    %600 = vmatpush2.msra.mxu0 0.0
    %601 = vmatprep.subr.mxu0 0.0
    %602 = vmatpush2.msra.mxu0 0.0
    %603 = vmatprep.subr.mxu0 0.0
    %604 = vmatpush2.msra.mxu0 0.0
    %605 = vmatprep.subr.mxu0 0.0
    %606 = vmatpush2.msra.mxu0 0.0
    %607 = vmatprep.subr.mxu0 0.0
    %608 = vmatpush2.msra.mxu0 0.0
    %609 = vmatprep.subr.mxu0 0.0
    %610 = vmatpush2.msra.mxu0 0.0
    %611 = vmatprep.subr.mxu0 0.0
    %612 = vmatpush2.msra.mxu0 0.0
    %613 = vmatprep.subr.mxu0 0.0
    %614 = vmatpush2.msra.mxu0 0.0
    %615 = vmatprep.subr.mxu0 0.0
    %616 = vmatpush2.msra.mxu0 0.0
    %617 = vmatprep.subr.mxu0 0.0
    %618 = vmatpush2.msra.mxu0 0.0
    %619 = vmatprep.subr.mxu0 0.0
    %620 = vmatpush2.msra.mxu0 0.0
    %621 = vmatprep.subr.mxu0 0.0
    %622 = vmatpush2.msra.mxu0 0.0
    %623 = vmatprep.mubr.f32.mxu0 0.0
    %624 = vmatmul.mubr.f32.gmra.mxu0 %v557
    %v625 = vpop.f32.mrf.mxu0
    %v626 = vadd.f32 0.0, %v625
    %v627 = vpop.f32.mrf.mxu0
    %628 = vdwg.mxu0
    %v630 = vrot.slane %v626, 4
    %v631 = vrot.slane %v626, 5
    %v634 = vadd.f32 %v195, %v630
    %v635 = vadd.f32 %v200, %v631
    %v636 = vtanh.pop %v634
    %v637 = vtanh.pop %v635
    %vm638 = vcmask 258052
    %639 = vst.msk [vmem:[#allocation2] sm:$0x10] %vm638, %v636
    %640 = vst.msk [vmem:[#allocation2 + $0x8] sm:$0x10] %vm638, %v637
    %v643 = vrot.slane %v636, 4
    %v644 = vrot.slane %v637, 3
    %v645 = vsel %vm290, %v644, %v643
    %v646 = vsel %vm121, %v645, 0
    %648 = vmatprep.subr.mxu0 0.0
    %649 = vmatpush1.msra.mxu0 0.0
    %650 = vmatprep.subr.mxu0 0.0
    %651 = vmatpush1.msra.mxu0 0.0
    %652 = vmatprep.subr.mxu0 0.0
    %653 = vmatpush1.msra.mxu0 0.0
    %654 = vmatprep.subr.mxu0 0.0
    %655 = vmatpush1.msra.mxu0 0.0
    %656 = vmatprep.subr.mxu0 0.0
    %657 = vmatpush1.msra.mxu0 0.0
    %658 = vmatprep.subr.mxu0 0.0
    %659 = vmatpush1.msra.mxu0 0.0
    %660 = vmatprep.subr.mxu0 0.0
    %661 = vmatpush1.msra.mxu0 0.0
    %662 = vmatprep.subr.mxu0 0.0
    %663 = vmatpush1.msra.mxu0 0.0
    %664 = vmatprep.subr.mxu0 0.0
    %665 = vmatpush1.msra.mxu0 0.0
    %666 = vmatprep.subr.mxu0 0.0
    %667 = vmatpush1.msra.mxu0 0.0
    %668 = vmatprep.subr.mxu0 0.0
    %669 = vmatpush1.msra.mxu0 0.0
    %670 = vmatprep.subr.mxu0 0.0
    %671 = vmatpush1.msra.mxu0 0.0
    %672 = vmatprep.subr.mxu0 0.0
    %673 = vmatpush1.msra.mxu0 %v25
    %674 = vmatprep.subr.mxu0 0.0
    %675 = vmatpush1.msra.mxu0 %v24
    %676 = vmatprep.subr.mxu0 0.0
    %677 = vmatpush1.msra.mxu0 %v23
    %678 = vmatprep.subr.mxu0 0.0
    %679 = vmatpush1.msra.mxu0 %v22
    %680 = vmatprep.subr.mxu0 0.0
    %681 = vmatpush2.msra.mxu0 0.0
    %682 = vmatprep.subr.mxu0 0.0
    %683 = vmatpush2.msra.mxu0 0.0
    %684 = vmatprep.subr.mxu0 0.0
    %685 = vmatpush2.msra.mxu0 0.0
    %686 = vmatprep.subr.mxu0 0.0
    %687 = vmatpush2.msra.mxu0 0.0
    %688 = vmatprep.subr.mxu0 0.0
    %689 = vmatpush2.msra.mxu0 0.0
    %690 = vmatprep.subr.mxu0 0.0
    %691 = vmatpush2.msra.mxu0 0.0
    %692 = vmatprep.subr.mxu0 0.0
    %693 = vmatpush2.msra.mxu0 0.0
    %694 = vmatprep.subr.mxu0 0.0
    %695 = vmatpush2.msra.mxu0 0.0
    %696 = vmatprep.subr.mxu0 0.0
    %697 = vmatpush2.msra.mxu0 0.0
    %698 = vmatprep.subr.mxu0 0.0
    %699 = vmatpush2.msra.mxu0 0.0
    %700 = vmatprep.subr.mxu0 0.0
    %701 = vmatpush2.msra.mxu0 0.0
    %702 = vmatprep.subr.mxu0 0.0
    %703 = vmatpush2.msra.mxu0 0.0
    %704 = vmatprep.subr.mxu0 0.0
    %705 = vmatpush2.msra.mxu0 0.0
    %706 = vmatprep.subr.mxu0 0.0
    %707 = vmatpush2.msra.mxu0 0.0
    %708 = vmatprep.subr.mxu0 0.0
    %709 = vmatpush2.msra.mxu0 0.0
    %710 = vmatprep.subr.mxu0 0.0
    %711 = vmatpush2.msra.mxu0 0.0
    %712 = vmatprep.mubr.f32.mxu0 0.0
    %713 = vmatmul.mubr.f32.gmra.mxu0 %v646
    %v714 = vpop.f32.mrf.mxu0
    %v715 = vadd.f32 0.0, %v714
    %v716 = vpop.f32.mrf.mxu0
    %717 = vdwg.mxu0
    %v719 = vrot.slane %v715, 3
    %v720 = vrot.slane %v715, 4
    %v723 = vadd.f32 %v195, %v719
    %v724 = vadd.f32 %v200, %v720
    %v725 = vtanh.pop %v723
    %v726 = vtanh.pop %v724
    %vm727 = vcmask 259077
    %728 = vst.msk [vmem:[#allocation2] sm:$0x20] %vm727, %v725
    %729 = vst.msk [vmem:[#allocation2 + $0x8] sm:$0x20] %vm727, %v726
    %v732 = vrot.slane %v725, 5
    %v733 = vrot.slane %v726, 4
    %v734 = vsel %vm290, %v733, %v732
    %v735 = vsel %vm121, %v734, 0
    %737 = vmatprep.subr.mxu0 0.0
    %738 = vmatpush1.msra.mxu0 0.0
    %739 = vmatprep.subr.mxu0 0.0
    %740 = vmatpush1.msra.mxu0 0.0
    %741 = vmatprep.subr.mxu0 0.0
    %742 = vmatpush1.msra.mxu0 0.0
    %743 = vmatprep.subr.mxu0 0.0
    %744 = vmatpush1.msra.mxu0 0.0
    %745 = vmatprep.subr.mxu0 0.0
    %746 = vmatpush1.msra.mxu0 0.0
    %747 = vmatprep.subr.mxu0 0.0
    %748 = vmatpush1.msra.mxu0 0.0
    %749 = vmatprep.subr.mxu0 0.0
    %750 = vmatpush1.msra.mxu0 0.0
    %751 = vmatprep.subr.mxu0 0.0
    %752 = vmatpush1.msra.mxu0 0.0
    %753 = vmatprep.subr.mxu0 0.0
    %754 = vmatpush1.msra.mxu0 0.0
    %755 = vmatprep.subr.mxu0 0.0
    %756 = vmatpush1.msra.mxu0 0.0
    %757 = vmatprep.subr.mxu0 0.0
    %758 = vmatpush1.msra.mxu0 0.0
    %759 = vmatprep.subr.mxu0 0.0
    %760 = vmatpush1.msra.mxu0 0.0
    %761 = vmatprep.subr.mxu0 0.0
    %762 = vmatpush1.msra.mxu0 %v25
    %763 = vmatprep.subr.mxu0 0.0
    %764 = vmatpush1.msra.mxu0 %v24
    %765 = vmatprep.subr.mxu0 0.0
    %766 = vmatpush1.msra.mxu0 %v23
    %767 = vmatprep.subr.mxu0 0.0
    %768 = vmatpush1.msra.mxu0 %v22
    %769 = vmatprep.subr.mxu0 0.0
    %770 = vmatpush2.msra.mxu0 0.0
    %771 = vmatprep.subr.mxu0 0.0
    %772 = vmatpush2.msra.mxu0 0.0
    %773 = vmatprep.subr.mxu0 0.0
    %774 = vmatpush2.msra.mxu0 0.0
    %775 = vmatprep.subr.mxu0 0.0
    %776 = vmatpush2.msra.mxu0 0.0
    %777 = vmatprep.subr.mxu0 0.0
    %778 = vmatpush2.msra.mxu0 0.0
    %779 = vmatprep.subr.mxu0 0.0
    %780 = vmatpush2.msra.mxu0 0.0
    %781 = vmatprep.subr.mxu0 0.0
    %782 = vmatpush2.msra.mxu0 0.0
    %783 = vmatprep.subr.mxu0 0.0
    %784 = vmatpush2.msra.mxu0 0.0
    %785 = vmatprep.subr.mxu0 0.0
    %786 = vmatpush2.msra.mxu0 0.0
    %787 = vmatprep.subr.mxu0 0.0
    %788 = vmatpush2.msra.mxu0 0.0
    %789 = vmatprep.subr.mxu0 0.0
    %790 = vmatpush2.msra.mxu0 0.0
    %791 = vmatprep.subr.mxu0 0.0
    %792 = vmatpush2.msra.mxu0 0.0
    %793 = vmatprep.subr.mxu0 0.0
    %794 = vmatpush2.msra.mxu0 0.0
    %795 = vmatprep.subr.mxu0 0.0
    %796 = vmatpush2.msra.mxu0 0.0
    %797 = vmatprep.subr.mxu0 0.0
    %798 = vmatpush2.msra.mxu0 0.0
    %799 = vmatprep.subr.mxu0 0.0
    %800 = vmatpush2.msra.mxu0 0.0
    %801 = vmatprep.mubr.f32.mxu0 0.0
    %802 = vmatmul.mubr.f32.gmra.mxu0 %v735
    %v803 = vpop.f32.mrf.mxu0
    %v804 = vadd.f32 0.0, %v803
    %v805 = vpop.f32.mrf.mxu0
    %806 = vdwg.mxu0
    %v808 = vrot.slane %v804, 2
    %v809 = vrot.slane %v804, 3
    %v812 = vadd.f32 %v195, %v808
    %v813 = vadd.f32 %v200, %v809
    %v814 = vtanh.pop %v812
    %v815 = vtanh.pop %v813
    %vm816 = vcmask 260102
    %817 = vst.msk [vmem:[#allocation2] sm:$0x40] %vm816, %v814
    %818 = vst.msk [vmem:[#allocation2 + $0x8] sm:$0x40] %vm816, %v815
    %v821 = vrot.slane %v814, 6
    %v822 = vrot.slane %v815, 5
    %v823 = vsel %vm290, %v822, %v821
    %v824 = vsel %vm121, %v823, 0
    %826 = vmatprep.subr.mxu0 0.0
    %827 = vmatpush1.msra.mxu0 0.0
    %828 = vmatprep.subr.mxu0 0.0
    %829 = vmatpush1.msra.mxu0 0.0
    %830 = vmatprep.subr.mxu0 0.0
    %831 = vmatpush1.msra.mxu0 0.0
    %832 = vmatprep.subr.mxu0 0.0
    %833 = vmatpush1.msra.mxu0 0.0
    %834 = vmatprep.subr.mxu0 0.0
    %835 = vmatpush1.msra.mxu0 0.0
    %836 = vmatprep.subr.mxu0 0.0
    %837 = vmatpush1.msra.mxu0 0.0
    %838 = vmatprep.subr.mxu0 0.0
    %839 = vmatpush1.msra.mxu0 0.0
    %840 = vmatprep.subr.mxu0 0.0
    %841 = vmatpush1.msra.mxu0 0.0
    %842 = vmatprep.subr.mxu0 0.0
    %843 = vmatpush1.msra.mxu0 0.0
    %844 = vmatprep.subr.mxu0 0.0
    %845 = vmatpush1.msra.mxu0 0.0
    %846 = vmatprep.subr.mxu0 0.0
    %847 = vmatpush1.msra.mxu0 0.0
    %848 = vmatprep.subr.mxu0 0.0
    %849 = vmatpush1.msra.mxu0 0.0
    %850 = vmatprep.subr.mxu0 0.0
    %851 = vmatpush1.msra.mxu0 %v25
    %852 = vmatprep.subr.mxu0 0.0
    %853 = vmatpush1.msra.mxu0 %v24
    %854 = vmatprep.subr.mxu0 0.0
    %855 = vmatpush1.msra.mxu0 %v23
    %856 = vmatprep.subr.mxu0 0.0
    %857 = vmatpush1.msra.mxu0 %v22
    %858 = vmatprep.subr.mxu0 0.0
    %859 = vmatpush2.msra.mxu0 0.0
    %860 = vmatprep.subr.mxu0 0.0
    %861 = vmatpush2.msra.mxu0 0.0
    %862 = vmatprep.subr.mxu0 0.0
    %863 = vmatpush2.msra.mxu0 0.0
    %864 = vmatprep.subr.mxu0 0.0
    %865 = vmatpush2.msra.mxu0 0.0
    %866 = vmatprep.subr.mxu0 0.0
    %867 = vmatpush2.msra.mxu0 0.0
    %868 = vmatprep.subr.mxu0 0.0
    %869 = vmatpush2.msra.mxu0 0.0
    %870 = vmatprep.subr.mxu0 0.0
    %871 = vmatpush2.msra.mxu0 0.0
    %872 = vmatprep.subr.mxu0 0.0
    %873 = vmatpush2.msra.mxu0 0.0
    %874 = vmatprep.subr.mxu0 0.0
    %875 = vmatpush2.msra.mxu0 0.0
    %876 = vmatprep.subr.mxu0 0.0
    %877 = vmatpush2.msra.mxu0 0.0
    %878 = vmatprep.subr.mxu0 0.0
    %879 = vmatpush2.msra.mxu0 0.0
    %880 = vmatprep.subr.mxu0 0.0
    %881 = vmatpush2.msra.mxu0 0.0
    %882 = vmatprep.subr.mxu0 0.0
    %883 = vmatpush2.msra.mxu0 0.0
    %884 = vmatprep.subr.mxu0 0.0
    %885 = vmatpush2.msra.mxu0 0.0
    %886 = vmatprep.subr.mxu0 0.0
    %887 = vmatpush2.msra.mxu0 0.0
    %888 = vmatprep.subr.mxu0 0.0
    %889 = vmatpush2.msra.mxu0 0.0
    %890 = vmatprep.mubr.f32.mxu0 0.0
    %891 = vmatmul.mubr.f32.gmra.mxu0 %v824
    %v892 = vpop.f32.mrf.mxu0
    %v893 = vadd.f32 0.0, %v892
    %v894 = vpop.f32.mrf.mxu0
    %895 = vdwg.mxu0
    %v897 = vrot.slane %v893, 1
    %v898 = vrot.slane %v893, 2
    %v901 = vadd.f32 %v195, %v897
    %v902 = vadd.f32 %v200, %v898
    %v903 = vtanh.pop %v901
    %v904 = vtanh.pop %v902
    %vm905 = vcmask 261127
    %906 = vst.msk [vmem:[#allocation2] sm:$0x80] %vm905, %v903
    %907 = vst.msk [vmem:[#allocation2 + $0x8] sm:$0x80] %vm905, %v904
    %v908 = vld [vmem:[#allocation2] sm:$0xff]
    %909 = vset.pattern.permute.xlu0 16
    %910 = vperm.xlu0 %909, %v12
    %v911 = vpop.permute.xlu0 %910
    %v913 = vmul.f32 %v908, %v911
    %915 = vset.pattern.permute.xlu0 0
    %916 = vperm.xlu0 %915, %v28
    %v917 = vpop.permute.xlu0 %916
    %v920 = vsel %vm121, %v27, 0
    %v923 = vsel %vm121, %v913, 0
    %925 = vmatprep.subr.mxu0 0.0
    %926 = vmatpush1.xpose.msra.mxu0 0.0
    %927 = vmatprep.subr.mxu0 0.0
    %928 = vmatpush1.xpose.msra.mxu0 0.0
    %929 = vmatprep.subr.mxu0 0.0
    %930 = vmatpush1.xpose.msra.mxu0 0.0
    %931 = vmatprep.subr.mxu0 0.0
    %932 = vmatpush1.xpose.msra.mxu0 0.0
    %933 = vmatprep.subr.mxu0 0.0
    %934 = vmatpush1.xpose.msra.mxu0 0.0
    %935 = vmatprep.subr.mxu0 0.0
    %936 = vmatpush1.xpose.msra.mxu0 0.0
    %937 = vmatprep.subr.mxu0 0.0
    %938 = vmatpush1.xpose.msra.mxu0 0.0
    %939 = vmatprep.subr.mxu0 0.0
    %940 = vmatpush1.xpose.msra.mxu0 0.0
    %941 = vmatprep.subr.mxu0 0.0
    %942 = vmatpush1.xpose.msra.mxu0 0.0
    %943 = vmatprep.subr.mxu0 0.0
    %944 = vmatpush1.xpose.msra.mxu0 0.0
    %945 = vmatprep.subr.mxu0 0.0
    %946 = vmatpush1.xpose.msra.mxu0 0.0
    %947 = vmatprep.subr.mxu0 0.0
    %948 = vmatpush1.xpose.msra.mxu0 0.0
    %949 = vmatprep.subr.mxu0 0.0
    %950 = vmatpush1.xpose.msra.mxu0 0.0
    %951 = vmatprep.subr.mxu0 0.0
    %952 = vmatpush1.xpose.msra.mxu0 0.0
    %953 = vmatprep.subr.mxu0 0.0
    %954 = vmatpush1.xpose.msra.mxu0 0.0
    %955 = vmatprep.subr.mxu0 0.0
    %956 = vmatpush1.xpose.msra.mxu0 %v923
    %957 = vmatprep.subr.mxu0 0.0
    %958 = vmatpush2.xpose.msra.mxu0 0.0
    %959 = vmatprep.subr.mxu0 0.0
    %960 = vmatpush2.xpose.msra.mxu0 0.0
    %961 = vmatprep.subr.mxu0 0.0
    %962 = vmatpush2.xpose.msra.mxu0 0.0
    %963 = vmatprep.subr.mxu0 0.0
    %964 = vmatpush2.xpose.msra.mxu0 0.0
    %965 = vmatprep.subr.mxu0 0.0
    %966 = vmatpush2.xpose.msra.mxu0 0.0
    %967 = vmatprep.subr.mxu0 0.0
    %968 = vmatpush2.xpose.msra.mxu0 0.0
    %969 = vmatprep.subr.mxu0 0.0
    %970 = vmatpush2.xpose.msra.mxu0 0.0
    %971 = vmatprep.subr.mxu0 0.0
    %972 = vmatpush2.xpose.msra.mxu0 0.0
    %973 = vmatprep.subr.mxu0 0.0
    %974 = vmatpush2.xpose.msra.mxu0 0.0
    %975 = vmatprep.subr.mxu0 0.0
    %976 = vmatpush2.xpose.msra.mxu0 0.0
    %977 = vmatprep.subr.mxu0 0.0
    %978 = vmatpush2.xpose.msra.mxu0 0.0
    %979 = vmatprep.subr.mxu0 0.0
    %980 = vmatpush2.xpose.msra.mxu0 0.0
    %981 = vmatprep.subr.mxu0 0.0
    %982 = vmatpush2.xpose.msra.mxu0 0.0
    %983 = vmatprep.subr.mxu0 0.0
    %984 = vmatpush2.xpose.msra.mxu0 0.0
    %985 = vmatprep.subr.mxu0 0.0
    %986 = vmatpush2.xpose.msra.mxu0 0.0
    %987 = vmatprep.subr.mxu0 0.0
    %988 = vmatpush2.xpose.msra.mxu0 0.0
    %989 = vmatprep.mubr.f32.mxu0 0.0
    %990 = vmatmul.mubr.f32.gmra.mxu0 %v920
    %v991 = vpop.f32.mrf.mxu0
    %v992 = vadd.f32 %v917, %v991
    %v993 = vpop.f32.mrf.mxu0
    %994 = vdwg.mxu0
    %vm995 = vcmask 60416
    %996 = vst.msk [vmem:[#allocation3] sm:$0xf] %vm995, %v992
    %s997 = scalar_lea.vmem [#allocation2], 8
    %v998 = vld [vmem:[%s997] sm:$0xff]
    %999 = vset.pattern.permute.xlu0 16
    %1000 = vperm.xlu0 %999, %v13
    %v1001 = vpop.permute.xlu0 %1000
    %v1003 = vmul.f32 %v998, %v1001
    %v1005 = vsel %vm121, %v1003, 0
    %1007 = vmatprep.subr.mxu0 0.0
    %1008 = vmatpush1.xpose.msra.mxu0 0.0
    %1009 = vmatprep.subr.mxu0 0.0
    %1010 = vmatpush1.xpose.msra.mxu0 0.0
    %1011 = vmatprep.subr.mxu0 0.0
    %1012 = vmatpush1.xpose.msra.mxu0 0.0
    %1013 = vmatprep.subr.mxu0 0.0
    %1014 = vmatpush1.xpose.msra.mxu0 0.0
    %1015 = vmatprep.subr.mxu0 0.0
    %1016 = vmatpush1.xpose.msra.mxu0 0.0
    %1017 = vmatprep.subr.mxu0 0.0
    %1018 = vmatpush1.xpose.msra.mxu0 0.0
    %1019 = vmatprep.subr.mxu0 0.0
    %1020 = vmatpush1.xpose.msra.mxu0 0.0
    %1021 = vmatprep.subr.mxu0 0.0
    %1022 = vmatpush1.xpose.msra.mxu0 0.0
    %1023 = vmatprep.subr.mxu0 0.0
    %1024 = vmatpush1.xpose.msra.mxu0 0.0
    %1025 = vmatprep.subr.mxu0 0.0
    %1026 = vmatpush1.xpose.msra.mxu0 0.0
    %1027 = vmatprep.subr.mxu0 0.0
    %1028 = vmatpush1.xpose.msra.mxu0 0.0
    %1029 = vmatprep.subr.mxu0 0.0
    %1030 = vmatpush1.xpose.msra.mxu0 0.0
    %1031 = vmatprep.subr.mxu0 0.0
    %1032 = vmatpush1.xpose.msra.mxu0 0.0
    %1033 = vmatprep.subr.mxu0 0.0
    %1034 = vmatpush1.xpose.msra.mxu0 0.0
    %1035 = vmatprep.subr.mxu0 0.0
    %1036 = vmatpush1.xpose.msra.mxu0 0.0
    %1037 = vmatprep.subr.mxu0 0.0
    %1038 = vmatpush1.xpose.msra.mxu0 %v1005
    %1039 = vmatprep.subr.mxu0 0.0
    %1040 = vmatpush2.xpose.msra.mxu0 0.0
    %1041 = vmatprep.subr.mxu0 0.0
    %1042 = vmatpush2.xpose.msra.mxu0 0.0
    %1043 = vmatprep.subr.mxu0 0.0
    %1044 = vmatpush2.xpose.msra.mxu0 0.0
    %1045 = vmatprep.subr.mxu0 0.0
    %1046 = vmatpush2.xpose.msra.mxu0 0.0
    %1047 = vmatprep.subr.mxu0 0.0
    %1048 = vmatpush2.xpose.msra.mxu0 0.0
    %1049 = vmatprep.subr.mxu0 0.0
    %1050 = vmatpush2.xpose.msra.mxu0 0.0
    %1051 = vmatprep.subr.mxu0 0.0
    %1052 = vmatpush2.xpose.msra.mxu0 0.0
    %1053 = vmatprep.subr.mxu0 0.0
    %1054 = vmatpush2.xpose.msra.mxu0 0.0
    %1055 = vmatprep.subr.mxu0 0.0
    %1056 = vmatpush2.xpose.msra.mxu0 0.0
    %1057 = vmatprep.subr.mxu0 0.0
    %1058 = vmatpush2.xpose.msra.mxu0 0.0
    %1059 = vmatprep.subr.mxu0 0.0
    %1060 = vmatpush2.xpose.msra.mxu0 0.0
    %1061 = vmatprep.subr.mxu0 0.0
    %1062 = vmatpush2.xpose.msra.mxu0 0.0
    %1063 = vmatprep.subr.mxu0 0.0
    %1064 = vmatpush2.xpose.msra.mxu0 0.0
    %1065 = vmatprep.subr.mxu0 0.0
    %1066 = vmatpush2.xpose.msra.mxu0 0.0
    %1067 = vmatprep.subr.mxu0 0.0
    %1068 = vmatpush2.xpose.msra.mxu0 0.0
    %1069 = vmatprep.subr.mxu0 0.0
    %1070 = vmatpush2.xpose.msra.mxu0 0.0
    %1071 = vmatprep.mubr.f32.mxu0 0.0
    %1072 = vmatmul.mubr.f32.gmra.mxu0 %v920
    %v1073 = vpop.f32.mrf.mxu0
    %v1074 = vadd.f32 %v917, %v1073
    %v1075 = vpop.f32.mrf.mxu0
    %1076 = vdwg.mxu0
    %s1077 = scalar_lea.vmem [#allocation3], 4
    %1078 = vst.msk [vmem:[%s1077] sm:$0xf] %vm995, %v1074
    // Predicated region
    $region10: #{seq_classifier_forward.1} parent=1 // pred_check
      _
    $region11: #{seq_classifier_forward.1} parent=1 // pred_check_branch
      %1080 = sbr.rel (0) target = $region13
    $region12: #{seq_classifier_forward.1} parent=1 // pred_region
      %s1082 = ssub.s32 128, 128
      %1083 = vsyncadd [#allocation4], %s1082
      %s1084 = sshll.u32 [#allocation3], 4
      %s1085 = int_to_ptr.vmem [resolvable:$true] %s1084
      %1090 = dma.vmem_to_hbm [thread:$0]  %s1085, 128, %s2, [#allocation4], 64, 64, 4
    $region13: #{seq_classifier_forward.1} parent=1 // pred_fallthru
      _
    // Predicated region
    $region14: #{seq_classifier_forward.1} parent=1 // pred_check
      _
    $region15: #{seq_classifier_forward.1} parent=1 // pred_check_branch
      %1092 = sbr.rel (0) target = $region17
    $region16: #{seq_classifier_forward.1} parent=1 // pred_region
      %1093 = dma.done [#allocation4], 128
    $region17: #{seq_classifier_forward.1} parent=1 // pred_fallthru
      _
    %1094 = vsyncpa [#allocation4], 1

</llo_original>
